<compile_context>
chip_gen: v5e
topology: v5e:2x2
jax: 0.10.0
libtpu: 0.0.40
codegen_flags: <defaults>
</compile_context>

<pallas_src>
import functools

import jax
import jax.numpy as jnp
from jax.experimental import pallas as pl
from jax.experimental.pallas import tpu as pltpu


MATMUL_DTYPE = jnp.bfloat16          # weight storage / matmul operand dtype
ACT_DTYPE = jnp.bfloat16             # inter-kernel activation dtype
VMEM_LIMIT_BYTES = 48 * 1024 * 1024  # explicit scoped VMEM budget (v5e/v6e/v7x safe)


def _nbytes(a):
    n = 1
    for s in a.shape:
        n *= int(s)
    return n * a.dtype.itemsize


def _ln(x, g, b, eps=1e-5):
    mu = jnp.mean(x, axis=-1, keepdims=True)
    var = jnp.mean((x - mu) ** 2, axis=-1, keepdims=True)
    return (x - mu) * jax.lax.rsqrt(var + eps) * g + b


# ----------------------------- Pallas kernels ------------------------------

def _linear_kernel(a_ref, w_ref, b_ref, o_ref):
    w = w_ref[...]
    a = a_ref[...].astype(w.dtype)
    y = jnp.dot(a, w, preferred_element_type=jnp.float32) + b_ref[...]
    o_ref[...] = y.astype(o_ref.dtype)


def _layernorm_kernel(x_ref, g_ref, b_ref, o_ref):
    x = x_ref[...].astype(jnp.float32)
    o_ref[...] = _ln(x, g_ref[...], b_ref[...]).astype(o_ref.dtype)


def _encoder_tower_kernel(x_ref,
                          ln1_g_ref, ln1_b_ref,
                          w_qkv_ref, b_qkv_ref,
                          wo_ref, bo_ref,
                          ln2_g_ref, ln2_b_ref,
                          fc1_w_ref, fc1_b_ref,
                          fc2_w_ref, fc2_b_ref,
                          o_ref, carry_ref,
                          *, num_heads, causal):
    """All CLIP encoder layers for one sequence: grid = (batch, layer)."""
    layer = pl.program_id(1)
    n_layers = pl.num_programs(1)

    # Load the embedding activation into the f32 VMEM carry at layer 0.
    @pl.when(layer == 0)
    def _():
        carry_ref[...] = x_ref[0].astype(jnp.float32)

    x = carry_ref[...]                                    # (T, D) f32
    T, D = x.shape
    Dh = D // num_heads
    scale = 1.0 / (Dh ** 0.5)

    # ---- LN1 -> fused QKV projection (single lane-dense (T, 3D) matmul) ----
    h = _ln(x, ln1_g_ref[0], ln1_b_ref[0])
    w_qkv = w_qkv_ref[0]
    qkv = jnp.dot(h.astype(w_qkv.dtype), w_qkv,
                  preferred_element_type=jnp.float32) + b_qkv_ref[0]
    q = qkv[:, 0 * D:1 * D] * scale                       # fold scale into q
    k = qkv[:, 1 * D:2 * D]
    v = qkv[:, 2 * D:3 * D]

    if causal:
        row = jax.lax.broadcasted_iota(jnp.int32, (T, T), 0)
        col = jax.lax.broadcasted_iota(jnp.int32, (T, T), 1)
        causal_bias = jnp.where(col <= row, 0.0, -1e9).astype(jnp.float32)

    # ---- per-head attention, O-projection accumulated per head -------------
    # Single lane-dense (T, D) accumulator; no lane-axis concat of heads.
    wo = wo_ref[0]
    attn = jnp.zeros((T, D), jnp.float32)
    for hh in range(num_heads):
        qh = q[:, hh * Dh:(hh + 1) * Dh]
        kh = k[:, hh * Dh:(hh + 1) * Dh]
        vh = v[:, hh * Dh:(hh + 1) * Dh]
        s = jax.lax.dot_general(qh, kh, (((1,), (1,)), ((), ())),
                                preferred_element_type=jnp.float32)
        if causal:
            s = s + causal_bias
        s = s - jnp.max(s, axis=-1, keepdims=True)
        p = jnp.exp(s)
        pv = jnp.dot(p, vh, preferred_element_type=jnp.float32)   # (T, Dh)
        # normalize the (T, Dh) output instead of the (T, T) probabilities
        pv = pv * pl.reciprocal(jnp.sum(p, axis=-1, keepdims=True), approx=True)
        wo_h = wo[hh * Dh:(hh + 1) * Dh, :]
        attn = attn + jnp.dot(pv.astype(wo_h.dtype), wo_h,
                              preferred_element_type=jnp.float32)

    x = x + attn + bo_ref[0]                              # residual 1

    # ---- LN2 -> MLP (QuickGELU) + residual ----------------------------------
    h2 = _ln(x, ln2_g_ref[0], ln2_b_ref[0])
    fc1_w = fc1_w_ref[0]
    h2 = jnp.dot(h2.astype(fc1_w.dtype), fc1_w,
                 preferred_element_type=jnp.float32) + fc1_b_ref[0]
    h2 = h2 * jax.nn.sigmoid(1.702 * h2)                  # QuickGELU in f32
    fc2_w = fc2_w_ref[0]
    mlp = jnp.dot(h2.astype(fc2_w.dtype), fc2_w,
                  preferred_element_type=jnp.float32) + fc2_b_ref[0]
    x = x + mlp

    carry_ref[...] = x                                    # carry to next layer

    @pl.when(layer == n_layers - 1)
    def _():
        o_ref[0] = x.astype(o_ref.dtype)


def _clip_tail_kernel(img_ref, vg_ref, vb_ref, vproj_ref,
                      txt_ref, tg_ref, tb_ref, tproj_ref,
                      o_ref, *, logit_scale):
    """post-LN + projections + L2-normalize + logits_per_image softmax."""
    img = _ln(img_ref[...].astype(jnp.float32), vg_ref[...], vb_ref[...])
    vproj = vproj_ref[...]
    img = jnp.dot(img.astype(vproj.dtype), vproj, preferred_element_type=jnp.float32)
    txt = _ln(txt_ref[...].astype(jnp.float32), tg_ref[...], tb_ref[...])
    tproj = tproj_ref[...]
    txt = jnp.dot(txt.astype(tproj.dtype), tproj, preferred_element_type=jnp.float32)
    img = img * jax.lax.rsqrt(jnp.sum(img * img, axis=-1, keepdims=True) + 1e-12)
    txt = txt * jax.lax.rsqrt(jnp.sum(txt * txt, axis=-1, keepdims=True) + 1e-12)
    logits = logit_scale * jax.lax.dot_general(
        img, txt, (((1,), (1,)), ((), ())), preferred_element_type=jnp.float32)
    logits = logits - jnp.max(logits, axis=-1, keepdims=True)
    e = jnp.exp(logits)
    o_ref[...] = (e / jnp.sum(e, axis=-1, keepdims=True)).astype(o_ref.dtype)


# ---------------------------- Pallas wrappers -------------------------------

def pallas_linear(x, w, b):
    M = x.shape[0]
    N = w.shape[1]
    return pl.pallas_call(
        _linear_kernel,
        out_shape=jax.ShapeDtypeStruct((M, N), jnp.float32),
    )(x, w, b.reshape(1, N))


def pallas_layernorm(x, g, b):
    M, D = x.shape
    return pl.pallas_call(
        _layernorm_kernel,
        out_shape=jax.ShapeDtypeStruct((M, D), jnp.float32),
    )(x, g.reshape(1, D), b.reshape(1, D))


def pallas_encoder_tower(x, layers, num_heads, causal):
    """Run all stacked encoder layers in a single pallas_call."""
    B, T, D = x.shape
    L = layers["w_qkv"].shape[0]
    MLP = layers["fc1_w"].shape[2]

    names = ("ln1_g", "ln1_b", "w_qkv", "b_qkv", "wo", "bo",
             "ln2_g", "ln2_b", "fc1_w", "fc1_b", "fc2_w", "fc2_b")
    w_args = tuple(layers[n] for n in names)

    def layer_spec(a):
        # Weight block indexed by the layer axis: layer l+1 is prefetched
        # (default double-buffering) while layer l computes.
        blk = (1,) + tuple(a.shape[1:])
        return pl.BlockSpec(blk, lambda b, l: (l, 0, 0))

    in_specs = [pl.BlockSpec((1, T, D), lambda b, l: (b, 0, 0))]
    in_specs += [layer_spec(a) for a in w_args]

    flops = int(B * L * (8 * T * D * D + 4 * T * T * D + 4 * T * D * MLP))
    transcendentals = int(B * L * (num_heads * T * T + T * MLP))
    bytes_accessed = int(B * sum(_nbytes(a) for a in w_args) + 2 * _nbytes(x))

    return pl.pallas_call(
        functools.partial(_encoder_tower_kernel,
                          num_heads=num_heads, causal=causal),
        out_shape=jax.ShapeDtypeStruct((B, T, D), ACT_DTYPE),
        grid=(B, L),
        in_specs=in_specs,
        out_specs=pl.BlockSpec((1, T, D), lambda b, l: (b, 0, 0)),
        scratch_shapes=[pltpu.VMEM((T, D), jnp.float32)],   # activation carry
        compiler_params=pltpu.CompilerParams(
            dimension_semantics=("parallel", "arbitrary"),
            vmem_limit_bytes=VMEM_LIMIT_BYTES),
        cost_estimate=pl.CostEstimate(flops=flops,
                                      transcendentals=transcendentals,
                                      bytes_accessed=bytes_accessed),
    )(x, *w_args)


def pallas_clip_tail(img_pooled, v_ln_g, v_ln_b, v_proj,
                     txt_pooled, t_ln_g, t_ln_b, t_proj, logit_scale):
    B = img_pooled.shape[0]
    Lbl = txt_pooled.shape[0]
    D = img_pooled.shape[1]
    return pl.pallas_call(
        functools.partial(_clip_tail_kernel, logit_scale=logit_scale),
        out_shape=jax.ShapeDtypeStruct((B, Lbl), jnp.float32),
    )(img_pooled, v_ln_g.reshape(1, D), v_ln_b.reshape(1, D), v_proj,
      txt_pooled, t_ln_g.reshape(1, D), t_ln_b.reshape(1, D), t_proj)


# --------------------------- model building blocks --------------------------

def vision_encoder(x_nchw, vparams, patch, num_heads):
    B, C, H, W = x_nchw.shape
    gh, gw = H // patch, W // patch
    D = vparams["patch_w"].shape[1]
    # conv(kernel=stride=patch) == patchify + matmul (patchify stays in XLA)
    xp = x_nchw.reshape(B, C, gh, patch, gw, patch)
    xp = xp.transpose(0, 2, 4, 1, 3, 5).reshape(B * gh * gw, C * patch * patch)
    tok = pallas_linear(xp, vparams["patch_w"], vparams["patch_b"]).reshape(B, gh * gw, D)
    cls = jnp.broadcast_to(vparams["cls"], (B, 1, D))
    x = jnp.concatenate([cls, tok], axis=1) + vparams["pos"]
    T = x.shape[1]
    x = pallas_layernorm(x.reshape(B * T, D), vparams["pre_ln_g"],
                         vparams["pre_ln_b"]).reshape(B, T, D)
    x = pallas_encoder_tower(x.astype(ACT_DTYPE), vparams["layers"],
                             num_heads, causal=False)
    return x[:, 0, :]                                     # pooled CLS (B, D)


def text_encoder(input_ids, tparams, num_heads):
    # TODO(synk): token-embedding gather stays in XLA (jnp.take).
    x = jnp.take(tparams["tok_emb"], input_ids, axis=0) + tparams["pos_emb"][None, :, :]
    x = pallas_encoder_tower(x.astype(ACT_DTYPE), tparams["layers"],
                             num_heads, causal=True)
    # TODO(synk): real CLIP pools the EOS-token position; last token used here.
    return x[:, -1, :]                                    # pooled (L, D)


def clip_forward(x, input_ids, vparams, tparams, logit_scale, patch, num_heads):
    img_pooled = vision_encoder(x, vparams, patch, num_heads)   # (B, D)
    txt_pooled = text_encoder(input_ids, tparams, num_heads)    # (L, D)
    return pallas_clip_tail(img_pooled,
                            vparams["post_ln_g"], vparams["post_ln_b"],
                            vparams["proj_w"],
                            txt_pooled,
                            tparams["ln_g"], tparams["ln_b"],
                            tparams["proj_w"],
                            logit_scale)                         # (B, L) probs


# ------------------------------ parameter init ------------------------------

def _w(key, shape, std=0.02, dtype=jnp.float32):
    return (std * jax.random.normal(key, shape)).astype(dtype)


def _init_tower_layers(key, num_layers, D, mlp):
    """Per-layer weights stacked along a leading layer axis."""
    ks = jax.random.split(key, 4)
    L = num_layers
    return dict(
        ln1_g=jnp.ones((L, 1, D), jnp.float32),
        ln1_b=jnp.zeros((L, 1, D), jnp.float32),
        # fused wq|wk|wv -> one (D, 3D) bf16 weight per layer (f32 accumulation)
        w_qkv=_w(ks[0], (L, D, 3 * D), dtype=MATMUL_DTYPE),
        b_qkv=jnp.zeros((L, 1, 3 * D), jnp.float32),
        wo=_w(ks[1], (L, D, D), dtype=MATMUL_DTYPE),
        bo=jnp.zeros((L, 1, D), jnp.float32),
        ln2_g=jnp.ones((L, 1, D), jnp.float32),
        ln2_b=jnp.zeros((L, 1, D), jnp.float32),
        fc1_w=_w(ks[2], (L, D, mlp), dtype=MATMUL_DTYPE),
        fc1_b=jnp.zeros((L, 1, mlp), jnp.float32),
        fc2_w=_w(ks[3], (L, mlp, D), dtype=MATMUL_DTYPE),
        fc2_b=jnp.zeros((L, 1, D), jnp.float32),
    )


def init_params(key, *, C, patch, seq_v, D, mlp, layers, P, V, T):
    kv, kt = jax.random.split(key)
    kvs = jax.random.split(kv, 5)
    kts = jax.random.split(kt, 5)
    vparams = dict(
        patch_w=_w(kvs[0], (C * patch * patch, D), dtype=MATMUL_DTYPE),
        patch_b=jnp.zeros((D,), jnp.float32),
        cls=_w(kvs[1], (1, 1, D)),
        pos=_w(kvs[2], (1, seq_v, D)),
        pre_ln_g=jnp.ones((D,), jnp.float32), pre_ln_b=jnp.zeros((D,), jnp.float32),
        layers=_init_tower_layers(kvs[4], layers, D, mlp),
        post_ln_g=jnp.ones((D,), jnp.float32), post_ln_b=jnp.zeros((D,), jnp.float32),
        proj_w=_w(kvs[3], (D, P), dtype=MATMUL_DTYPE),      # bias-free like CLIP
    )
    tparams = dict(
        tok_emb=_w(kts[0], (V, D)),
        pos_emb=_w(kts[1], (T, D)),
        layers=_init_tower_layers(kts[4], layers, D, mlp),
        ln_g=jnp.ones((D,), jnp.float32), ln_b=jnp.zeros((D,), jnp.float32),
        proj_w=_w(kts[2], (D, P), dtype=MATMUL_DTYPE),      # bias-free like CLIP
    )
    return vparams, tparams


# ----------------------------------- main ------------------------------------

if __name__ == "__main__":
    # small synthetic CLIP config
    B, C, H, W, PATCH = 2, 3, 32, 32, 16        # 2x2 = 4 patches + CLS = 5 tokens
    D, HEADS, MLP, LAYERS, PROJ = 64, 4, 256, 2, 32
    NUM_LABELS, SEQ_T, VOCAB = 3, 8, 64
    LOGIT_SCALE = float(1.0 / 0.07)             # CLIP's exp(log(1/0.07))

    key = jax.random.PRNGKey(0)
    k_img, k_txt, k_par = jax.random.split(key, 3)

    x = jax.random.normal(k_img, (B, C, H, W), jnp.float32)               # pixel_values (NCHW)
    input_ids = jax.random.randint(k_txt, (NUM_LABELS, SEQ_T), 0, VOCAB)  # "tokenized" labels

    seq_v = (H // PATCH) * (W // PATCH) + 1
    vparams, tparams = init_params(
        k_par, C=C, patch=PATCH, seq_v=seq_v, D=D, mlp=MLP,
        layers=LAYERS, P=PROJ, V=VOCAB, T=SEQ_T)

    probs = clip_forward(x, input_ids, vparams, tparams, LOGIT_SCALE, PATCH, HEADS)
    probs = jax.block_until_ready(probs)

    assert probs.shape == (B, NUM_LABELS)
    assert bool(jnp.all(jnp.isfinite(probs)))
    assert bool(jnp.allclose(jnp.sum(probs, axis=1), 1.0, atol=1e-3))
    print("KERNEL_OK")
</pallas_src>

<mosaic_0001>
module attributes {stable_mosaic.version = 11 : i64} {
  func.func @_linear_kernel(%arg0: memref<8x768xf32, #tpu.memory_space<vmem>>, %arg1: memref<768x64xbf16, #tpu.memory_space<vmem>>, %arg2: memref<1x64xf32, #tpu.memory_space<vmem>>, %arg3: memref<8x64xf32, #tpu.memory_space<vmem>>) attributes {dimension_semantics = [], scalar_prefetch = 0 : i64, scratch_operands = 0 : i64, tpu.core_type = #tpu.core_type<tc>} {
    %c0 = arith.constant 0 : index
    %c0_0 = arith.constant 0 : index
    %0 = vector.load %arg1[%c0, %c0_0] : memref<768x64xbf16, #tpu.memory_space<vmem>>, vector<768x64xbf16>
    %c0_1 = arith.constant 0 : index
    %c0_2 = arith.constant 0 : index
    %1 = vector.load %arg0[%c0_1, %c0_2] : memref<8x768xf32, #tpu.memory_space<vmem>>, vector<8x768xf32>
    %2 = arith.truncf %1 : vector<8x768xf32> to vector<8x768xbf16>
    %cst = arith.constant dense<0.000000e+00> : vector<8x64xf32>
    %3 = tpu.matmul %2, %0, %cst {dimension_numbers = #tpu.dot_dimension_numbers<[1], [0], [0], [1], [0, 0, 1, 1], [], []>} : vector<8x768xbf16>, vector<768x64xbf16>, vector<8x64xf32> -> vector<8x64xf32>
    %c0_3 = arith.constant 0 : index
    %c0_4 = arith.constant 0 : index
    %4 = vector.load %arg2[%c0_3, %c0_4] : memref<1x64xf32, #tpu.memory_space<vmem>>, vector<1x64xf32>
    %5 = vector.broadcast %4 : vector<1x64xf32> to vector<8x64xf32>
    %6 = arith.addf %3, %5 : vector<8x64xf32>
    %c0_5 = arith.constant 0 : index
    %c0_6 = arith.constant 0 : index
    %7 = vector.load %arg3[%c0_5, %c0_6] : memref<8x64xf32, #tpu.memory_space<vmem>>, vector<8x64xf32>
    tpu.vector_store %arg3[%c0_5, %c0_6], %6 {strides = array<i32>} : memref<8x64xf32, #tpu.memory_space<vmem>>, vector<8x64xf32>,
    return
  }
}

</mosaic_0001>

<llo_original>
// kernel: tpu_custom_call.1
$region0: #{tpu_custom_call.1}
  #allocation0 [shape = 'u32[]', space=smem, size = 0x4, offset = 0x4, fixed_abs, tag = 'smem constant byte address 0x4 - core index']
  #allocation1 [shape = 'u32[72,128]{1,0:T(1,128)}', space=vmem, size = 0x9000, scoped, tag = 'internal scratch']
  %s0 = inlined_call_operand.vmem [shape: f32[8,768], index: 0, kind: input, shape index: {}]
  %s1 = inlined_call_operand.vmem [shape: bf16[768,64], index: 1, kind: input, shape index: {}]
  %s2 = inlined_call_operand.vmem [shape: f32[1,64], index: 2, kind: input, shape index: {}]
  %s3 = inlined_call_operand.hbm [shape: f32[8,64], index: 3, kind: output, shape index: {}]
  %s4 = sld [smem:[#allocation0]]
  $region22: #{tpu_custom_call.1} parent=0
    _
  %s6 = ssub.s32 1, %s4
  %s7 = scalar_select 0, %s6, %s4
  $region1: #{tpu_custom_call.1} parent=0
    #allocation2 [shape = 'u8[4096]{0}', space=vmem, size = 0x1000, scoped, tag = 'output window, operand 0, single buffered']
    #allocation3 [shape = 's32[1]{0}', space=sflag, size = 0x4, scoped, tag = 'scoped memory for tpu_custom_call.1']
    %8 = vsyncpa [#allocation3], 0
    // Predicated region
    $region2: #{tpu_custom_call.1} parent=1 // pred_check
      _
    $region3: #{tpu_custom_call.1} parent=1 // pred_check_branch
      %10 = sbr.rel (0) target = $region5
    $region4: #{tpu_custom_call.1} parent=1 // pred_region
      _
    $region5: #{tpu_custom_call.1} parent=1 // pred_fallthru
      _
    // Predicated region
    $region6: #{tpu_custom_call.1} parent=1 // pred_check
      _
    $region7: #{tpu_custom_call.1} parent=1 // pred_check_branch
      %12 = sbr.rel (0) target = $region9
    $region8: #{tpu_custom_call.1} parent=1 // pred_region
      _
    $region9: #{tpu_custom_call.1} parent=1 // pred_fallthru
      _
    // Predicated region
    $region10: #{tpu_custom_call.1} parent=1 // pred_check
      _
    $region11: #{tpu_custom_call.1} parent=1 // pred_check_branch
      %14 = sbr.rel (0) target = $region13
    $region12: #{tpu_custom_call.1} parent=1 // pred_region
      _
    $region13: #{tpu_custom_call.1} parent=1 // pred_fallthru
      _
    %v15 = vld [vmem:[%s1] sm:$0xf]
    %v16 = vld [vmem:[%s1 + $0x4] sm:$0xf]
    %v17 = vld [vmem:[%s1 + $0x8] sm:$0xf]
    %v18 = vld [vmem:[%s1 + $0xc] sm:$0xf]
    %v19 = vld [vmem:[%s1 + $0x10] sm:$0xf]
    %v20 = vld [vmem:[%s1 + $0x14] sm:$0xf]
    %v21 = vld [vmem:[%s1 + $0x18] sm:$0xf]
    %v22 = vld [vmem:[%s1 + $0x1c] sm:$0xf]
    %v23 = vld [vmem:[%s1 + $0x20] sm:$0xf]
    %v24 = vld [vmem:[%s1 + $0x24] sm:$0xf]
    %v25 = vld [vmem:[%s1 + $0x28] sm:$0xf]
    %v26 = vld [vmem:[%s1 + $0x2c] sm:$0xf]
    %v27 = vld [vmem:[%s1 + $0x30] sm:$0xf]
    %v28 = vld [vmem:[%s1 + $0x34] sm:$0xf]
    %v29 = vld [vmem:[%s1 + $0x38] sm:$0xf]
    %v30 = vld [vmem:[%s1 + $0x3c] sm:$0xf]
    %v31 = vld [vmem:[%s1 + $0x40] sm:$0xf]
    %v32 = vld [vmem:[%s1 + $0x44] sm:$0xf]
    %v33 = vld [vmem:[%s1 + $0x48] sm:$0xf]
    %v34 = vld [vmem:[%s1 + $0x4c] sm:$0xf]
    %v35 = vld [vmem:[%s1 + $0x50] sm:$0xf]
    %v36 = vld [vmem:[%s1 + $0x54] sm:$0xf]
    %v37 = vld [vmem:[%s1 + $0x58] sm:$0xf]
    %v38 = vld [vmem:[%s1 + $0x5c] sm:$0xf]
    %v39 = vld [vmem:[%s1 + $0x60] sm:$0xf]
    %v40 = vld [vmem:[%s1 + $0x64] sm:$0xf]
    %v41 = vld [vmem:[%s1 + $0x68] sm:$0xf]
    %v42 = vld [vmem:[%s1 + $0x6c] sm:$0xf]
    %v43 = vld [vmem:[%s1 + $0x70] sm:$0xf]
    %v44 = vld [vmem:[%s1 + $0x74] sm:$0xf]
    %v45 = vld [vmem:[%s1 + $0x78] sm:$0xf]
    %v46 = vld [vmem:[%s1 + $0x7c] sm:$0xf]
    %v47 = vld [vmem:[%s1 + $0x80] sm:$0xf]
    %v48 = vld [vmem:[%s1 + $0x84] sm:$0xf]
    %v49 = vld [vmem:[%s1 + $0x88] sm:$0xf]
    %v50 = vld [vmem:[%s1 + $0x8c] sm:$0xf]
    %v51 = vld [vmem:[%s1 + $0x90] sm:$0xf]
    %v52 = vld [vmem:[%s1 + $0x94] sm:$0xf]
    %v53 = vld [vmem:[%s1 + $0x98] sm:$0xf]
    %v54 = vld [vmem:[%s1 + $0x9c] sm:$0xf]
    %v55 = vld [vmem:[%s1 + $0xa0] sm:$0xf]
    %v56 = vld [vmem:[%s1 + $0xa4] sm:$0xf]
    %v57 = vld [vmem:[%s1 + $0xa8] sm:$0xf]
    %v58 = vld [vmem:[%s1 + $0xac] sm:$0xf]
    %v59 = vld [vmem:[%s1 + $0xb0] sm:$0xf]
    %v60 = vld [vmem:[%s1 + $0xb4] sm:$0xf]
    %v61 = vld [vmem:[%s1 + $0xb8] sm:$0xf]
    %v62 = vld [vmem:[%s1 + $0xbc] sm:$0xf]
    %v63 = vld [vmem:[%s1 + $0xc0] sm:$0xf]
    %v64 = vld [vmem:[%s1 + $0xc4] sm:$0xf]
    %v65 = vld [vmem:[%s1 + $0xc8] sm:$0xf]
    %v66 = vld [vmem:[%s1 + $0xcc] sm:$0xf]
    %v67 = vld [vmem:[%s1 + $0xd0] sm:$0xf]
    %v68 = vld [vmem:[%s1 + $0xd4] sm:$0xf]
    %v69 = vld [vmem:[%s1 + $0xd8] sm:$0xf]
    %v70 = vld [vmem:[%s1 + $0xdc] sm:$0xf]
    %v71 = vld [vmem:[%s1 + $0xe0] sm:$0xf]
    %v72 = vld [vmem:[%s1 + $0xe4] sm:$0xf]
    %v73 = vld [vmem:[%s1 + $0xe8] sm:$0xf]
    %v74 = vld [vmem:[%s1 + $0xec] sm:$0xf]
    %v75 = vld [vmem:[%s1 + $0xf0] sm:$0xf]
    %v76 = vld [vmem:[%s1 + $0xf4] sm:$0xf]
    %v77 = vld [vmem:[%s1 + $0xf8] sm:$0xf]
    %v78 = vld [vmem:[%s1 + $0xfc] sm:$0xf]
    %v79 = vld [vmem:[%s1 + $0x100] sm:$0xf]
    %v80 = vld [vmem:[%s1 + $0x104] sm:$0xf]
    %v81 = vld [vmem:[%s1 + $0x108] sm:$0xf]
    %v82 = vld [vmem:[%s1 + $0x10c] sm:$0xf]
    %v83 = vld [vmem:[%s1 + $0x110] sm:$0xf]
    %v84 = vld [vmem:[%s1 + $0x114] sm:$0xf]
    %v85 = vld [vmem:[%s1 + $0x118] sm:$0xf]
    %v86 = vld [vmem:[%s1 + $0x11c] sm:$0xf]
    %v87 = vld [vmem:[%s1 + $0x120] sm:$0xf]
    %v88 = vld [vmem:[%s1 + $0x124] sm:$0xf]
    %v89 = vld [vmem:[%s1 + $0x128] sm:$0xf]
    %v90 = vld [vmem:[%s1 + $0x12c] sm:$0xf]
    %v91 = vld [vmem:[%s1 + $0x130] sm:$0xf]
    %v92 = vld [vmem:[%s1 + $0x134] sm:$0xf]
    %v93 = vld [vmem:[%s1 + $0x138] sm:$0xf]
    %v94 = vld [vmem:[%s1 + $0x13c] sm:$0xf]
    %v95 = vld [vmem:[%s1 + $0x140] sm:$0xf]
    %v96 = vld [vmem:[%s1 + $0x144] sm:$0xf]
    %v97 = vld [vmem:[%s1 + $0x148] sm:$0xf]
    %v98 = vld [vmem:[%s1 + $0x14c] sm:$0xf]
    %v99 = vld [vmem:[%s1 + $0x150] sm:$0xf]
    %v100 = vld [vmem:[%s1 + $0x154] sm:$0xf]
    %v101 = vld [vmem:[%s1 + $0x158] sm:$0xf]
    %v102 = vld [vmem:[%s1 + $0x15c] sm:$0xf]
    %v103 = vld [vmem:[%s1 + $0x160] sm:$0xf]
    %v104 = vld [vmem:[%s1 + $0x164] sm:$0xf]
    %v105 = vld [vmem:[%s1 + $0x168] sm:$0xf]
    %v106 = vld [vmem:[%s1 + $0x16c] sm:$0xf]
    %v107 = vld [vmem:[%s1 + $0x170] sm:$0xf]
    %v108 = vld [vmem:[%s1 + $0x174] sm:$0xf]
    %v109 = vld [vmem:[%s1 + $0x178] sm:$0xf]
    %v110 = vld [vmem:[%s1 + $0x17c] sm:$0xf]
    %v111 = vld [vmem:[%s0] sm:$0xff]
    %v112 = vld [vmem:[%s0 + $0x8] sm:$0xff]
    %v113 = vld [vmem:[%s0 + $0x10] sm:$0xff]
    %v114 = vld [vmem:[%s0 + $0x18] sm:$0xff]
    %v115 = vld [vmem:[%s0 + $0x20] sm:$0xff]
    %v116 = vld [vmem:[%s0 + $0x28] sm:$0xff]
    %v117 = vpack.c.bf16 %v111, %v111
    %v118 = vpack.c.bf16 %v112, %v112
    %v119 = vpack.c.bf16 %v113, %v113
    %v120 = vpack.c.bf16 %v114, %v114
    %v121 = vpack.c.bf16 %v115, %v115
    %v122 = vpack.c.bf16 %v116, %v116
    %v123 = vld [vmem:[%s2] sm:$0x1]
    %v125 = vperm.slane %v123, 0
    %v223 = vunpack.c.l.b16 %v15
    %v224 = vunpack.c.l.b16 %v16
    %v225 = vunpack.c.l.b16 %v17
    %v226 = vunpack.c.l.b16 %v18
    %v227 = vunpack.c.l.b16 %v19
    %v228 = vunpack.c.l.b16 %v20
    %v229 = vunpack.c.l.b16 %v21
    %v230 = vunpack.c.l.b16 %v22
    %v231 = vunpack.c.l.b16 %v23
    %v232 = vunpack.c.l.b16 %v24
    %v233 = vunpack.c.l.b16 %v25
    %v234 = vunpack.c.l.b16 %v26
    %v235 = vunpack.c.l.b16 %v27
    %v236 = vunpack.c.l.b16 %v28
    %v237 = vunpack.c.l.b16 %v29
    %v238 = vunpack.c.l.b16 %v30
    %v239 = vunpack.c.l.b16 %v31
    %v240 = vunpack.c.l.b16 %v32
    %v241 = vunpack.c.l.b16 %v33
    %v242 = vunpack.c.l.b16 %v34
    %v243 = vunpack.c.l.b16 %v35
    %v244 = vunpack.c.l.b16 %v36
    %v245 = vunpack.c.l.b16 %v37
    %v246 = vunpack.c.l.b16 %v38
    %v247 = vunpack.c.l.b16 %v39
    %v248 = vunpack.c.l.b16 %v40
    %v249 = vunpack.c.l.b16 %v41
    %v250 = vunpack.c.l.b16 %v42
    %v251 = vunpack.c.l.b16 %v43
    %v252 = vunpack.c.l.b16 %v44
    %v253 = vunpack.c.l.b16 %v45
    %v254 = vunpack.c.l.b16 %v46
    %v255 = vunpack.c.l.b16 %v47
    %v256 = vunpack.c.l.b16 %v48
    %v257 = vunpack.c.l.b16 %v49
    %v258 = vunpack.c.l.b16 %v50
    %v259 = vunpack.c.l.b16 %v51
    %v260 = vunpack.c.l.b16 %v52
    %v261 = vunpack.c.l.b16 %v53
    %v262 = vunpack.c.l.b16 %v54
    %v263 = vunpack.c.l.b16 %v55
    %v264 = vunpack.c.l.b16 %v56
    %v265 = vunpack.c.l.b16 %v57
    %v266 = vunpack.c.l.b16 %v58
    %v267 = vunpack.c.l.b16 %v59
    %v268 = vunpack.c.l.b16 %v60
    %v269 = vunpack.c.l.b16 %v61
    %v270 = vunpack.c.l.b16 %v62
    %v271 = vunpack.c.l.b16 %v63
    %v272 = vunpack.c.l.b16 %v64
    %v273 = vunpack.c.l.b16 %v65
    %v274 = vunpack.c.l.b16 %v66
    %v275 = vunpack.c.l.b16 %v67
    %v276 = vunpack.c.l.b16 %v68
    %v277 = vunpack.c.l.b16 %v69
    %v278 = vunpack.c.l.b16 %v70
    %v279 = vunpack.c.l.b16 %v71
    %v280 = vunpack.c.l.b16 %v72
    %v281 = vunpack.c.l.b16 %v73
    %v282 = vunpack.c.l.b16 %v74
    %v283 = vunpack.c.l.b16 %v75
    %v284 = vunpack.c.l.b16 %v76
    %v285 = vunpack.c.l.b16 %v77
    %v286 = vunpack.c.l.b16 %v78
    %v287 = vunpack.c.l.b16 %v79
    %v288 = vunpack.c.l.b16 %v80
    %v289 = vunpack.c.l.b16 %v81
    %v290 = vunpack.c.l.b16 %v82
    %v291 = vunpack.c.l.b16 %v83
    %v292 = vunpack.c.l.b16 %v84
    %v293 = vunpack.c.l.b16 %v85
    %v294 = vunpack.c.l.b16 %v86
    %v295 = vunpack.c.l.b16 %v87
    %v296 = vunpack.c.l.b16 %v88
    %v297 = vunpack.c.l.b16 %v89
    %v298 = vunpack.c.l.b16 %v90
    %v299 = vunpack.c.l.b16 %v91
    %v300 = vunpack.c.l.b16 %v92
    %v301 = vunpack.c.l.b16 %v93
    %v302 = vunpack.c.l.b16 %v94
    %v303 = vunpack.c.l.b16 %v95
    %v304 = vunpack.c.l.b16 %v96
    %v305 = vunpack.c.l.b16 %v97
    %v306 = vunpack.c.l.b16 %v98
    %v307 = vunpack.c.l.b16 %v99
    %v308 = vunpack.c.l.b16 %v100
    %v309 = vunpack.c.l.b16 %v101
    %v310 = vunpack.c.l.b16 %v102
    %v311 = vunpack.c.l.b16 %v103
    %v312 = vunpack.c.l.b16 %v104
    %v313 = vunpack.c.l.b16 %v105
    %v314 = vunpack.c.l.b16 %v106
    %v315 = vunpack.c.l.b16 %v107
    %v316 = vunpack.c.l.b16 %v108
    %v317 = vunpack.c.l.b16 %v109
    %v318 = vunpack.c.l.b16 %v110
    %v319 = vpack.c.b16 %v224, %v223
    %v320 = vpack.c.b16 %v226, %v225
    %v321 = vpack.c.b16 %v228, %v227
    %v322 = vpack.c.b16 %v230, %v229
    %v323 = vpack.c.b16 %v232, %v231
    %v324 = vpack.c.b16 %v234, %v233
    %v325 = vpack.c.b16 %v236, %v235
    %v326 = vpack.c.b16 %v238, %v237
    %v327 = vpack.c.b16 %v240, %v239
    %v328 = vpack.c.b16 %v242, %v241
    %v329 = vpack.c.b16 %v244, %v243
    %v330 = vpack.c.b16 %v246, %v245
    %v331 = vpack.c.b16 %v248, %v247
    %v332 = vpack.c.b16 %v250, %v249
    %v333 = vpack.c.b16 %v252, %v251
    %v334 = vpack.c.b16 %v254, %v253
    %v335 = vpack.c.b16 %v256, %v255
    %v336 = vpack.c.b16 %v258, %v257
    %v337 = vpack.c.b16 %v260, %v259
    %v338 = vpack.c.b16 %v262, %v261
    %v339 = vpack.c.b16 %v264, %v263
    %v340 = vpack.c.b16 %v266, %v265
    %v341 = vpack.c.b16 %v268, %v267
    %v342 = vpack.c.b16 %v270, %v269
    %v343 = vpack.c.b16 %v272, %v271
    %v344 = vpack.c.b16 %v274, %v273
    %v345 = vpack.c.b16 %v276, %v275
    %v346 = vpack.c.b16 %v278, %v277
    %v347 = vpack.c.b16 %v280, %v279
    %v348 = vpack.c.b16 %v282, %v281
    %v349 = vpack.c.b16 %v284, %v283
    %v350 = vpack.c.b16 %v286, %v285
    %v351 = vpack.c.b16 %v288, %v287
    %v352 = vpack.c.b16 %v290, %v289
    %v353 = vpack.c.b16 %v292, %v291
    %v354 = vpack.c.b16 %v294, %v293
    %v355 = vpack.c.b16 %v296, %v295
    %v356 = vpack.c.b16 %v298, %v297
    %v357 = vpack.c.b16 %v300, %v299
    %v358 = vpack.c.b16 %v302, %v301
    %v359 = vpack.c.b16 %v304, %v303
    %v360 = vpack.c.b16 %v306, %v305
    %v361 = vpack.c.b16 %v308, %v307
    %v362 = vpack.c.b16 %v310, %v309
    %v363 = vpack.c.b16 %v312, %v311
    %v364 = vpack.c.b16 %v314, %v313
    %v365 = vpack.c.b16 %v316, %v315
    %v366 = vpack.c.b16 %v318, %v317
    %415 = vmatpush.bf16.msra.mxu0 %v326
    %416 = vmatpush.bf16.msra.mxu0 %v325
    %417 = vmatpush.bf16.msra.mxu0 %v324
    %418 = vmatpush.bf16.msra.mxu0 %v323
    %419 = vmatpush.bf16.msra.mxu0 %v322
    %420 = vmatpush.bf16.msra.mxu0 %v321
    %421 = vmatpush.bf16.msra.mxu0 %v320
    %422 = vmatpush.bf16.msra.mxu0 %v319
    %423 = vmatmul.bf16.gmra.mxu0 %v117
    %v424 = vpop.f32.mrf.mxu0
    %v425 = vadd.f32 %v125, %v424
    %v426 = vpop.f32.mrf.mxu0
    %427 = vdwg.mxu0
    %428 = vmatpush.bf16.msra.mxu0 %v334
    %429 = vmatpush.bf16.msra.mxu0 %v333
    %430 = vmatpush.bf16.msra.mxu0 %v332
    %431 = vmatpush.bf16.msra.mxu0 %v331
    %432 = vmatpush.bf16.msra.mxu0 %v330
    %433 = vmatpush.bf16.msra.mxu0 %v329
    %434 = vmatpush.bf16.msra.mxu0 %v328
    %435 = vmatpush.bf16.msra.mxu0 %v327
    %436 = vmatmul.bf16.gmra.mxu0 %v118
    %v437 = vpop.f32.mrf.mxu0
    %v438 = vadd.f32 %v425, %v437
    %v439 = vpop.f32.mrf.mxu0
    %440 = vdwg.mxu0
    %441 = vmatpush.bf16.msra.mxu0 %v342
    %442 = vmatpush.bf16.msra.mxu0 %v341
    %443 = vmatpush.bf16.msra.mxu0 %v340
    %444 = vmatpush.bf16.msra.mxu0 %v339
    %445 = vmatpush.bf16.msra.mxu0 %v338
    %446 = vmatpush.bf16.msra.mxu0 %v337
    %447 = vmatpush.bf16.msra.mxu0 %v336
    %448 = vmatpush.bf16.msra.mxu0 %v335
    %449 = vmatmul.bf16.gmra.mxu0 %v119
    %v450 = vpop.f32.mrf.mxu0
    %v451 = vadd.f32 %v438, %v450
    %v452 = vpop.f32.mrf.mxu0
    %453 = vdwg.mxu0
    %454 = vmatpush.bf16.msra.mxu0 %v350
    %455 = vmatpush.bf16.msra.mxu0 %v349
    %456 = vmatpush.bf16.msra.mxu0 %v348
    %457 = vmatpush.bf16.msra.mxu0 %v347
    %458 = vmatpush.bf16.msra.mxu0 %v346
    %459 = vmatpush.bf16.msra.mxu0 %v345
    %460 = vmatpush.bf16.msra.mxu0 %v344
    %461 = vmatpush.bf16.msra.mxu0 %v343
    %462 = vmatmul.bf16.gmra.mxu0 %v120
    %v463 = vpop.f32.mrf.mxu0
    %v464 = vadd.f32 %v451, %v463
    %v465 = vpop.f32.mrf.mxu0
    %466 = vdwg.mxu0
    %467 = vmatpush.bf16.msra.mxu0 %v358
    %468 = vmatpush.bf16.msra.mxu0 %v357
    %469 = vmatpush.bf16.msra.mxu0 %v356
    %470 = vmatpush.bf16.msra.mxu0 %v355
    %471 = vmatpush.bf16.msra.mxu0 %v354
    %472 = vmatpush.bf16.msra.mxu0 %v353
    %473 = vmatpush.bf16.msra.mxu0 %v352
    %474 = vmatpush.bf16.msra.mxu0 %v351
    %475 = vmatmul.bf16.gmra.mxu0 %v121
    %v476 = vpop.f32.mrf.mxu0
    %v477 = vadd.f32 %v464, %v476
    %v478 = vpop.f32.mrf.mxu0
    %479 = vdwg.mxu0
    %480 = vmatpush.bf16.msra.mxu0 %v366
    %481 = vmatpush.bf16.msra.mxu0 %v365
    %482 = vmatpush.bf16.msra.mxu0 %v364
    %483 = vmatpush.bf16.msra.mxu0 %v363
    %484 = vmatpush.bf16.msra.mxu0 %v362
    %485 = vmatpush.bf16.msra.mxu0 %v361
    %486 = vmatpush.bf16.msra.mxu0 %v360
    %487 = vmatpush.bf16.msra.mxu0 %v359
    %488 = vmatmul.bf16.gmra.mxu0 %v122
    %v489 = vpop.f32.mrf.mxu0
    %v490 = vadd.f32 %v477, %v489
    %v491 = vpop.f32.mrf.mxu0
    %492 = vdwg.mxu0
    %vm493 = vcmask 523264
    %494 = vst.msk [vmem:[#allocation2] sm:$0xff] %vm493, %v490
    // Predicated region
    $region14: #{tpu_custom_call.1} parent=1 // pred_check
      _
    $region15: #{tpu_custom_call.1} parent=1 // pred_check_branch
      %496 = sbr.rel (0) target = $region17
    $region16: #{tpu_custom_call.1} parent=1 // pred_region
      %498 = vsyncadd [#allocation3], 0
      %s500 = sshll.u32 [#allocation2], 4
      %s501 = int_to_ptr.vmem [resolvable:$true] %s500
      %s502 = sshll.u32 %s3, 4
      %s503 = int_to_ptr.hbm [resolvable:$true] %s502
      %505 = dma.vmem_to_hbm [thread:$0]  %s501, 128, %s503, [#allocation3]
    $region17: #{tpu_custom_call.1} parent=1 // pred_fallthru
      _
    // Predicated region
    $region18: #{tpu_custom_call.1} parent=1 // pred_check
      _
    $region19: #{tpu_custom_call.1} parent=1 // pred_check_branch
      %507 = sbr.rel (0) target = $region21
    $region20: #{tpu_custom_call.1} parent=1 // pred_region
      %509 = dma.done [#allocation3], 128
    $region21: #{tpu_custom_call.1} parent=1 // pred_fallthru
      _
    %510 = vsyncpa [#allocation3], 1

</llo_original>
